<compile_context>
chip_gen: v6e
topology: v6e:2x2x1
jax: 0.10.0
libtpu: 0.0.40
codegen_flags: <defaults>
</compile_context>

<pallas_src>
import functools
import math

import jax
import jax.numpy as jnp
from jax.experimental import pallas as pl
from jax.experimental.pallas import tpu as pltpu

_LOG_2PI = math.log(2.0 * math.pi)


# ----------------------------------------------------------------------------
# Single fused kernel: model MLP -> NLL -> sampling -> value MLP -> VAML
# ----------------------------------------------------------------------------
def _va_loss_kernel(
    # inputs
    obs_ref, act_ref, new_obs_ref, eps_ref,
    mw1o_ref, mw1a_ref, mb1_ref,
    mw2l_ref, mb2l_ref, mw2v_ref, mb2v_ref,
    vw1_ref, vb1_ref, vw2r_ref, vb2_ref,
    # outputs
    loc_ref, logvar_ref, scalars_ref,
    *, samples,
):
    batch, obs_dim = loc_ref.shape

    obs = obs_ref[...]
    act = act_ref[...]
    new_obs = new_obs_ref[...]

    # ---- stochastic model MLP (split heads: no lane slicing of the output)
    h = jnp.tanh(
        jnp.dot(obs, mw1o_ref[...], preferred_element_type=jnp.float32)
        + jnp.dot(act, mw1a_ref[...], preferred_element_type=jnp.float32)
        + mb1_ref[...]
    )
    loc = (
        jnp.dot(h, mw2l_ref[...], preferred_element_type=jnp.float32)
        + mb2l_ref[...]
    )
    logvar = (
        jnp.dot(h, mw2v_ref[...], preferred_element_type=jnp.float32)
        + mb2v_ref[...]
    )
    loc_ref[...] = loc
    logvar_ref[...] = logvar

    # ---- NLL: diag-Gaussian log prob, fully reduced in-kernel -------------
    # Clamp only the exponent args as a numerical guard; the linear +logvar
    # term keeps the reference value exactly.
    lv_safe = jnp.clip(logvar, -30.0, 30.0)
    diff = new_obs - loc
    per_dim = -0.5 * (diff * diff * jnp.exp(-lv_safe) + logvar + _LOG_2PI)
    logp_rows = jnp.sum(per_dim, axis=-1, keepdims=True)              # [B,1]
    nll = -jnp.sum(logp_rows, axis=0, keepdims=True) * (1.0 / batch)  # (1,1)
    # TODO(synk): LogVarReg source unavailable; simple quadratic penalty on
    # the predicted log-variances as a deterministic stand-in.
    lv2_rows = jnp.sum(logvar * logvar, axis=-1, keepdims=True)
    reg = 0.01 * jnp.sum(lv2_rows, axis=0, keepdims=True) * (
        1.0 / (batch * obs_dim)
    )
    nll_total = nll + reg

    # ---- reparameterized samples, stacked with new_obs entirely in vregs --
    scale = jnp.exp(0.5 * lv_safe)
    loc_t = jnp.concatenate([loc] * samples, axis=0)        # [S*B, D]
    scale_t = jnp.concatenate([scale] * samples, axis=0)    # [S*B, D]
    pred_rows = loc_t + scale_t * eps_ref[...]               # one FMA, one draw
    rows = jnp.concatenate([new_obs, pred_rows], axis=0)     # [(S+1)*B, D]

    # ---- ONE tall value layer-1 matmul + VPU value head -------------------
    vh = jnp.tanh(
        jnp.dot(rows, vw1_ref[...], preferred_element_type=jnp.float32)
        + vb1_ref[...]
    )                                                        # [(S+1)*B, H]
    # value head: [M,H]x[H,1] done as VPU multiply + lane reduce (vw2 is
    # passed pre-transposed as (1, H)); avoids a 1-lane MXU result.
    v_all = (
        jnp.sum(vh * vw2r_ref[...], axis=-1, keepdims=True)
        + vb2_ref[...]
    )                                                        # [(S+1)*B, 1]

    target_v = v_all[0:batch, :]                             # rows of new_obs
    sum_pv = v_all[batch:2 * batch, :]
    for s in range(1, samples):   # samples is small & static -> unrolled
        sum_pv = sum_pv + v_all[(s + 1) * batch:(s + 2) * batch, :]
    mean_pv = sum_pv * (1.0 / samples)

    d = target_v - mean_pv
    pointwise = 0.5 * d * d                                  # [B,1], never stored
    vae = jnp.sum(pointwise, axis=0, keepdims=True) * (1.0 / batch)  # (1,1)
    # TODO(synk): VAEstimator.forward is abstract in the reference; the
    # pathwise (reparameterized) surrogate coincides with vae in value.
    surr = vae

    # ---- pack the three scalar losses into one (1, 8) row: ONE store ------
    lane = jax.lax.broadcasted_iota(jnp.int32, (1, 8), 1)
    packed = jnp.where(
        lane == 0, surr,
        jnp.where(lane == 1, vae,
                  jnp.where(lane == 2, nll_total, 0.0)))
    scalars_ref[...] = packed


# ----------------------------------------------------------------------------
# VALoss forward wrapper
# ----------------------------------------------------------------------------
def va_loss(obs, action, new_obs, noise_key, model_params, value_params, samples):
    mw1, mb1, mw2, mb2 = model_params
    vw1, vb1, vw2, vb2 = value_params
    batch, obs_dim = obs.shape
    act_dim = action.shape[1]
    hidden_m = mb1.shape[1]
    hidden_v = vb1.shape[1]

    # Split first-layer / head weights outside the kernel (one-time, constant-
    # folded under jit) so no lane slicing happens on the hot path. Value head
    # weight is pre-transposed to (1, hidden) for the VPU head.
    mw1o, mw1a = mw1[:obs_dim], mw1[obs_dim:]
    mw2l, mw2v = mw2[:, :obs_dim], mw2[:, obs_dim:]
    mb2l, mb2v = mb2[:, :obs_dim], mb2[:, obs_dim:]
    vw2r = vw2.T                                             # (1, hidden)

    # Single reparameterization-noise draw for all samples.
    eps = jax.random.normal(noise_key, (samples * batch, obs_dim), jnp.float32)

    vmem = pl.BlockSpec(memory_space=pltpu.MemorySpace.VMEM)

    out_shape = (
        jax.ShapeDtypeStruct((batch, obs_dim), jnp.float32),   # loc
        jax.ShapeDtypeStruct((batch, obs_dim), jnp.float32),   # log_var
        jax.ShapeDtypeStruct((1, 8), jnp.float32),             # [surr, vae, nll]
    )

    # Advisory cost estimate for XLA scheduling around the fused call.
    m_rows = (samples + 1) * batch
    flops = (
        2 * batch * (obs_dim + act_dim) * hidden_m     # model layer 1
        + 2 * batch * hidden_m * (2 * obs_dim)         # model heads
        + 2 * m_rows * obs_dim * hidden_v              # tall value layer 1
        + 2 * m_rows * hidden_v                        # VPU value head
    )
    transcendentals = (
        batch * hidden_m + m_rows * hidden_v           # tanh
        + 2 * batch * obs_dim                          # exp(-lv), exp(lv/2)
    )
    in_elems = (
        obs.size + action.size + new_obs.size + eps.size
        + mw1.size + mb1.size + mw2.size + mb2.size
        + vw1.size + vb1.size + vw2.size + vb2.size
    )
    out_elems = 2 * batch * obs_dim + 8
    cost = pl.CostEstimate(
        flops=int(flops),
        transcendentals=int(transcendentals),
        bytes_accessed=int(4 * (in_elems + out_elems)),
    )

    loc, logvar, scalars = pl.pallas_call(
        functools.partial(_va_loss_kernel, samples=samples),
        out_shape=out_shape,
        in_specs=[vmem] * 15,
        out_specs=(vmem, vmem, vmem),
        cost_estimate=cost,
    )(
        obs, action, new_obs, eps,
        mw1o, mw1a, mb1, mw2l, mb2l, mw2v, mb2v,
        vw1, vb1, vw2r, vb2,
    )

    params = {"loc": loc, "log_var": logvar}
    return scalars[0, 0], scalars[0, 1], scalars[0, 2], params


# ----------------------------------------------------------------------------
# Deterministic parameter init + example run
# ----------------------------------------------------------------------------
def _init_linear(key, fan_in, fan_out):
    kw, kb = jax.random.split(key)
    lim = 1.0 / jnp.sqrt(fan_in)
    w = jax.random.uniform(kw, (fan_in, fan_out), jnp.float32, -lim, lim)
    b = jax.random.uniform(kb, (1, fan_out), jnp.float32, -lim, lim)
    return w, b


if __name__ == "__main__":
    batch, obs_dim, act_dim, hidden, samples = 8, 16, 4, 32, 4

    root = jax.random.PRNGKey(0)
    k_obs, k_act, k_new, k_m1, k_m2, k_v1, k_v2, k_eps = jax.random.split(root, 8)

    obs = jax.random.normal(k_obs, (batch, obs_dim), jnp.float32)
    action = jax.random.normal(k_act, (batch, act_dim), jnp.float32)
    new_obs = jax.random.normal(k_new, (batch, obs_dim), jnp.float32)

    # StochasticModel params: concat(obs, act) -> hidden -> 2*obs_dim
    mw1, mb1 = _init_linear(k_m1, obs_dim + act_dim, hidden)
    mw2, mb2 = _init_linear(k_m2, hidden, 2 * obs_dim)
    # VValue params: obs -> hidden -> 1
    vw1, vb1 = _init_linear(k_v1, obs_dim, hidden)
    vw2, vb2 = _init_linear(k_v2, hidden, 1)

    fwd = jax.jit(
        lambda o, a, no, k: va_loss(
            o, a, no, k,
            (mw1, mb1, mw2, mb2),
            (vw1, vb1, vw2, vb2),
            samples,
        )
    )
    surr, vae, nll, params = fwd(obs, action, new_obs, k_eps)
    jax.block_until_ready((surr, vae, nll, params))

    assert surr.shape == () and vae.shape == () and nll.shape == ()
    assert params["loc"].shape == (batch, obs_dim)
    assert params["log_var"].shape == (batch, obs_dim)
    assert jnp.isfinite(surr) and jnp.isfinite(vae) and jnp.isfinite(nll)
    assert bool(jnp.all(jnp.isfinite(params["loc"])))
    assert bool(jnp.all(jnp.isfinite(params["log_var"])))
    assert float(vae) >= 0.0 and float(surr) == float(vae)

    print("KERNEL_OK")
</pallas_src>

<mosaic_0001>
module attributes {stable_mosaic.version = 11 : i64} {
  func.func @_va_loss_kernel(%arg0: memref<8x16xf32, #tpu.memory_space<vmem>>, %arg1: memref<8x4xf32, #tpu.memory_space<vmem>>, %arg2: memref<8x16xf32, #tpu.memory_space<vmem>>, %arg3: memref<32x16xf32, #tpu.memory_space<vmem>>, %arg4: memref<16x32xf32, #tpu.memory_space<vmem>>, %arg5: memref<4x32xf32, #tpu.memory_space<vmem>>, %arg6: memref<1x32xf32, #tpu.memory_space<vmem>>, %arg7: memref<32x16xf32, #tpu.memory_space<vmem>>, %arg8: memref<1x16xf32, #tpu.memory_space<vmem>>, %arg9: memref<32x16xf32, #tpu.memory_space<vmem>>, %arg10: memref<1x16xf32, #tpu.memory_space<vmem>>, %arg11: memref<16x32xf32, #tpu.memory_space<vmem>>, %arg12: memref<1x32xf32, #tpu.memory_space<vmem>>, %arg13: memref<1x32xf32, #tpu.memory_space<vmem>>, %arg14: memref<1x1xf32, #tpu.memory_space<vmem>>, %arg15: memref<8x16xf32, #tpu.memory_space<vmem>>, %arg16: memref<8x16xf32, #tpu.memory_space<vmem>>, %arg17: memref<1x8xf32, #tpu.memory_space<vmem>>) attributes {dimension_semantics = [], scalar_prefetch = 0 : i64, scratch_operands = 0 : i64, tpu.core_type = #tpu.core_type<tc>} {
    %c0 = arith.constant 0 : index
    %c0_0 = arith.constant 0 : index
    %0 = vector.load %arg0[%c0, %c0_0] : memref<8x16xf32, #tpu.memory_space<vmem>>, vector<8x16xf32>
    %c0_1 = arith.constant 0 : index
    %c0_2 = arith.constant 0 : index
    %1 = vector.load %arg1[%c0_1, %c0_2] : memref<8x4xf32, #tpu.memory_space<vmem>>, vector<8x4xf32>
    %c0_3 = arith.constant 0 : index
    %c0_4 = arith.constant 0 : index
    %2 = vector.load %arg2[%c0_3, %c0_4] : memref<8x16xf32, #tpu.memory_space<vmem>>, vector<8x16xf32>
    %c0_5 = arith.constant 0 : index
    %c0_6 = arith.constant 0 : index
    %3 = vector.load %arg4[%c0_5, %c0_6] : memref<16x32xf32, #tpu.memory_space<vmem>>, vector<16x32xf32>
    %cst = arith.constant dense<0.000000e+00> : vector<8x32xf32>
    %4 = tpu.matmul %0, %3, %cst {dimension_numbers = #tpu.dot_dimension_numbers<[1], [0], [0], [1], [0, 0, 1, 1], [], []>} : vector<8x16xf32>, vector<16x32xf32>, vector<8x32xf32> -> vector<8x32xf32>
    %c0_7 = arith.constant 0 : index
    %c0_8 = arith.constant 0 : index
    %5 = vector.load %arg5[%c0_7, %c0_8] : memref<4x32xf32, #tpu.memory_space<vmem>>, vector<4x32xf32>
    %cst_9 = arith.constant dense<0.000000e+00> : vector<8x32xf32>
    %6 = tpu.matmul %1, %5, %cst_9 {dimension_numbers = #tpu.dot_dimension_numbers<[1], [0], [0], [1], [0, 0, 1, 1], [], []>} : vector<8x4xf32>, vector<4x32xf32>, vector<8x32xf32> -> vector<8x32xf32>
    %7 = arith.addf %4, %6 : vector<8x32xf32>
    %c0_10 = arith.constant 0 : index
    %c0_11 = arith.constant 0 : index
    %8 = vector.load %arg6[%c0_10, %c0_11] : memref<1x32xf32, #tpu.memory_space<vmem>>, vector<1x32xf32>
    %9 = vector.broadcast %8 : vector<1x32xf32> to vector<8x32xf32>
    %10 = arith.addf %7, %9 : vector<8x32xf32>
    %11 = math.tanh %10 : vector<8x32xf32>
    %c0_12 = arith.constant 0 : index
    %c0_13 = arith.constant 0 : index
    %12 = vector.load %arg7[%c0_12, %c0_13] : memref<32x16xf32, #tpu.memory_space<vmem>>, vector<32x16xf32>
    %cst_14 = arith.constant dense<0.000000e+00> : vector<8x16xf32>
    %13 = tpu.matmul %11, %12, %cst_14 {dimension_numbers = #tpu.dot_dimension_numbers<[1], [0], [0], [1], [0, 0, 1, 1], [], []>} : vector<8x32xf32>, vector<32x16xf32>, vector<8x16xf32> -> vector<8x16xf32>
    %c0_15 = arith.constant 0 : index
    %c0_16 = arith.constant 0 : index
    %14 = vector.load %arg8[%c0_15, %c0_16] : memref<1x16xf32, #tpu.memory_space<vmem>>, vector<1x16xf32>
    %15 = vector.broadcast %14 : vector<1x16xf32> to vector<8x16xf32>
    %16 = arith.addf %13, %15 : vector<8x16xf32>
    %c0_17 = arith.constant 0 : index
    %c0_18 = arith.constant 0 : index
    %17 = vector.load %arg9[%c0_17, %c0_18] : memref<32x16xf32, #tpu.memory_space<vmem>>, vector<32x16xf32>
    %cst_19 = arith.constant dense<0.000000e+00> : vector<8x16xf32>
    %18 = tpu.matmul %11, %17, %cst_19 {dimension_numbers = #tpu.dot_dimension_numbers<[1], [0], [0], [1], [0, 0, 1, 1], [], []>} : vector<8x32xf32>, vector<32x16xf32>, vector<8x16xf32> -> vector<8x16xf32>
    %c0_20 = arith.constant 0 : index
    %c0_21 = arith.constant 0 : index
    %19 = vector.load %arg10[%c0_20, %c0_21] : memref<1x16xf32, #tpu.memory_space<vmem>>, vector<1x16xf32>
    %20 = vector.broadcast %19 : vector<1x16xf32> to vector<8x16xf32>
    %21 = arith.addf %18, %20 : vector<8x16xf32>
    %c0_22 = arith.constant 0 : index
    %c0_23 = arith.constant 0 : index
    %22 = vector.load %arg15[%c0_22, %c0_23] : memref<8x16xf32, #tpu.memory_space<vmem>>, vector<8x16xf32>
    tpu.vector_store %arg15[%c0_22, %c0_23], %16 {strides = array<i32>} : memref<8x16xf32, #tpu.memory_space<vmem>>, vector<8x16xf32>,
    %c0_24 = arith.constant 0 : index
    %c0_25 = arith.constant 0 : index
    %23 = vector.load %arg16[%c0_24, %c0_25] : memref<8x16xf32, #tpu.memory_space<vmem>>, vector<8x16xf32>
    tpu.vector_store %arg16[%c0_24, %c0_25], %21 {strides = array<i32>} : memref<8x16xf32, #tpu.memory_space<vmem>>, vector<8x16xf32>,
    %cst_26 = arith.constant -3.000000e+01 : f32
    %cst_27 = arith.constant 3.000000e+01 : f32
    %24 = vector.broadcast %cst_26 : f32 to vector<8x16xf32>
    %25 = arith.maximumf %24, %21 : vector<8x16xf32>
    %26 = vector.broadcast %cst_27 : f32 to vector<8x16xf32>
    %27 = arith.minimumf %26, %25 : vector<8x16xf32>
    %28 = arith.subf %2, %16 : vector<8x16xf32>
    %29 = arith.mulf %28, %28 : vector<8x16xf32>
    %cst_28 = arith.constant 0.000000e+00 : f32
    %30 = vector.broadcast %cst_28 : f32 to vector<8x16xf32>
    %31 = arith.subf %30, %27 : vector<8x16xf32>
    %32 = math.exp %31 : vector<8x16xf32>
    %33 = arith.mulf %29, %32 : vector<8x16xf32>
    %34 = arith.addf %33, %21 : vector<8x16xf32>
    %cst_29 = arith.constant 1.83787704 : f32
    %35 = vector.broadcast %cst_29 : f32 to vector<8x16xf32>
    %36 = arith.addf %34, %35 : vector<8x16xf32>
    %cst_30 = arith.constant -5.000000e-01 : f32
    %37 = vector.broadcast %cst_30 : f32 to vector<8x16xf32>
    %38 = arith.mulf %37, %36 : vector<8x16xf32>
    %cst_31 = arith.constant dense<0.000000e+00> : vector<8xf32>
    %39 = vector.multi_reduction <add>, %38, %cst_31 [1] : vector<8x16xf32> to vector<8xf32>
    %40 = vector.shape_cast %39 : vector<8xf32> to vector<8x1xf32>
    %cst_32 = arith.constant dense<0.000000e+00> : vector<1xf32>
    %41 = vector.multi_reduction <add>, %40, %cst_32 [0] : vector<8x1xf32> to vector<1xf32>
    %42 = vector.shape_cast %41 : vector<1xf32> to vector<1x1xf32>
    %cst_33 = arith.constant 0.000000e+00 : f32
    %43 = vector.broadcast %cst_33 : f32 to vector<1x1xf32>
    %44 = arith.subf %43, %42 : vector<1x1xf32>
    %cst_34 = arith.constant 1.250000e-01 : f32
    %45 = vector.broadcast %cst_34 : f32 to vector<1x1xf32>
    %46 = arith.mulf %44, %45 : vector<1x1xf32>
    %47 = arith.mulf %21, %21 : vector<8x16xf32>
    %cst_35 = arith.constant dense<0.000000e+00> : vector<8xf32>
    %48 = vector.multi_reduction <add>, %47, %cst_35 [1] : vector<8x16xf32> to vector<8xf32>
    %49 = vector.shape_cast %48 : vector<8xf32> to vector<8x1xf32>
    %cst_36 = arith.constant dense<0.000000e+00> : vector<1xf32>
    %50 = vector.multi_reduction <add>, %49, %cst_36 [0] : vector<8x1xf32> to vector<1xf32>
    %51 = vector.shape_cast %50 : vector<1xf32> to vector<1x1xf32>
    %cst_37 = arith.constant 0.00999999977 : f32
    %52 = vector.broadcast %cst_37 : f32 to vector<1x1xf32>
    %53 = arith.mulf %52, %51 : vector<1x1xf32>
    %cst_38 = arith.constant 7.812500e-03 : f32
    %54 = vector.broadcast %cst_38 : f32 to vector<1x1xf32>
    %55 = arith.mulf %53, %54 : vector<1x1xf32>
    %56 = arith.addf %46, %55 : vector<1x1xf32>
    %cst_39 = arith.constant 5.000000e-01 : f32
    %57 = vector.broadcast %cst_39 : f32 to vector<8x16xf32>
    %58 = arith.mulf %57, %27 : vector<8x16xf32>
    %59 = math.exp %58 : vector<8x16xf32>
    %60 = tpu.concatenate %16, %16, %16, %16 in 0 : vector<8x16xf32>, vector<8x16xf32>, vector<8x16xf32>, vector<8x16xf32> -> vector<32x16xf32>
    %61 = tpu.concatenate %59, %59, %59, %59 in 0 : vector<8x16xf32>, vector<8x16xf32>, vector<8x16xf32>, vector<8x16xf32> -> vector<32x16xf32>
    %c0_40 = arith.constant 0 : index
    %c0_41 = arith.constant 0 : index
    %62 = vector.load %arg3[%c0_40, %c0_41] : memref<32x16xf32, #tpu.memory_space<vmem>>, vector<32x16xf32>
    %63 = arith.mulf %61, %62 : vector<32x16xf32>
    %64 = arith.addf %60, %63 : vector<32x16xf32>
    %65 = tpu.concatenate %2, %64 in 0 : vector<8x16xf32>, vector<32x16xf32> -> vector<40x16xf32>
    %c0_42 = arith.constant 0 : index
    %c0_43 = arith.constant 0 : index
    %66 = vector.load %arg11[%c0_42, %c0_43] : memref<16x32xf32, #tpu.memory_space<vmem>>, vector<16x32xf32>
    %cst_44 = arith.constant dense<0.000000e+00> : vector<40x32xf32>
    %67 = tpu.matmul %65, %66, %cst_44 {dimension_numbers = #tpu.dot_dimension_numbers<[1], [0], [0], [1], [0, 0, 1, 1], [], []>} : vector<40x16xf32>, vector<16x32xf32>, vector<40x32xf32> -> vector<40x32xf32>
    %c0_45 = arith.constant 0 : index
    %c0_46 = arith.constant 0 : index
    %68 = vector.load %arg12[%c0_45, %c0_46] : memref<1x32xf32, #tpu.memory_space<vmem>>, vector<1x32xf32>
    %69 = vector.broadcast %68 : vector<1x32xf32> to vector<40x32xf32>
    %70 = arith.addf %67, %69 : vector<40x32xf32>
    %71 = math.tanh %70 : vector<40x32xf32>
    %c0_47 = arith.constant 0 : index
    %c0_48 = arith.constant 0 : index
    %72 = vector.load %arg13[%c0_47, %c0_48] : memref<1x32xf32, #tpu.memory_space<vmem>>, vector<1x32xf32>
    %73 = vector.broadcast %72 : vector<1x32xf32> to vector<40x32xf32>
    %74 = arith.mulf %71, %73 : vector<40x32xf32>
    %cst_49 = arith.constant dense<0.000000e+00> : vector<40xf32>
    %75 = vector.multi_reduction <add>, %74, %cst_49 [1] : vector<40x32xf32> to vector<40xf32>
    %76 = vector.shape_cast %75 : vector<40xf32> to vector<40x1xf32>
    %c0_50 = arith.constant 0 : index
    %c0_51 = arith.constant 0 : index
    %77 = vector.load %arg14[%c0_50, %c0_51] : memref<1x1xf32, #tpu.memory_space<vmem>>, vector<1x1xf32>
    %78 = vector.broadcast %77 : vector<1x1xf32> to vector<40x1xf32>
    %79 = arith.addf %76, %78 : vector<40x1xf32>
    %80 = vector.extract_strided_slice %79 {offsets = [0, 0], sizes = [8, 1], strides = [1, 1]} : vector<40x1xf32> to vector<8x1xf32>
    %81 = vector.extract_strided_slice %79 {offsets = [8, 0], sizes = [8, 1], strides = [1, 1]} : vector<40x1xf32> to vector<8x1xf32>
    %82 = vector.extract_strided_slice %79 {offsets = [16, 0], sizes = [8, 1], strides = [1, 1]} : vector<40x1xf32> to vector<8x1xf32>
    %83 = arith.addf %81, %82 : vector<8x1xf32>
    %84 = vector.extract_strided_slice %79 {offsets = [24, 0], sizes = [8, 1], strides = [1, 1]} : vector<40x1xf32> to vector<8x1xf32>
    %85 = arith.addf %83, %84 : vector<8x1xf32>
    %86 = vector.extract_strided_slice %79 {offsets = [32, 0], sizes = [8, 1], strides = [1, 1]} : vector<40x1xf32> to vector<8x1xf32>
    %87 = arith.addf %85, %86 : vector<8x1xf32>
    %cst_52 = arith.constant 2.500000e-01 : f32
    %88 = vector.broadcast %cst_52 : f32 to vector<8x1xf32>
    %89 = arith.mulf %87, %88 : vector<8x1xf32>
    %90 = arith.subf %80, %89 : vector<8x1xf32>
    %cst_53 = arith.constant 5.000000e-01 : f32
    %91 = vector.broadcast %cst_53 : f32 to vector<8x1xf32>
    %92 = arith.mulf %91, %90 : vector<8x1xf32>
    %93 = arith.mulf %92, %90 : vector<8x1xf32>
    %cst_54 = arith.constant dense<0.000000e+00> : vector<1xf32>
    %94 = vector.multi_reduction <add>, %93, %cst_54 [0] : vector<8x1xf32> to vector<1xf32>
    %95 = vector.shape_cast %94 : vector<1xf32> to vector<1x1xf32>
    %cst_55 = arith.constant 1.250000e-01 : f32
    %96 = vector.broadcast %cst_55 : f32 to vector<1x1xf32>
    %97 = arith.mulf %95, %96 : vector<1x1xf32>
    %98 = tpu.iota {dimensions = array<i32: 1>} : vector<1x8xi32>
    %c0_i32 = arith.constant 0 : i32
    %99 = vector.broadcast %c0_i32 : i32 to vector<1x8xi32>
    %100 = arith.cmpi eq, %98, %99 : vector<1x8xi32>
    %c1_i32 = arith.constant 1 : i32
    %101 = vector.broadcast %c1_i32 : i32 to vector<1x8xi32>
    %102 = arith.cmpi eq, %98, %101 : vector<1x8xi32>
    %c2_i32 = arith.constant 2 : i32
    %103 = vector.broadcast %c2_i32 : i32 to vector<1x8xi32>
    %104 = arith.cmpi eq, %98, %103 : vector<1x8xi32>
    %cst_56 = arith.constant 0.000000e+00 : f32
    %105 = vector.shape_cast %56 : vector<1x1xf32> to vector<1x1xf32>
    %106 = vector.broadcast %105 : vector<1x1xf32> to vector<1x8xf32>
    %107 = vector.broadcast %cst_56 : f32 to vector<1x8xf32>
    %108 = arith.select %104, %106, %107 : vector<1x8xi1>, vector<1x8xf32>
    %109 = vector.shape_cast %97 : vector<1x1xf32> to vector<1x1xf32>
    %110 = vector.broadcast %109 : vector<1x1xf32> to vector<1x8xf32>
    %111 = arith.select %102, %110, %108 : vector<1x8xi1>, vector<1x8xf32>
    %112 = vector.shape_cast %97 : vector<1x1xf32> to vector<1x1xf32>
    %113 = vector.broadcast %112 : vector<1x1xf32> to vector<1x8xf32>
    %114 = arith.select %100, %113, %111 : vector<1x8xi1>, vector<1x8xf32>
    %c0_57 = arith.constant 0 : index
    %c0_58 = arith.constant 0 : index
    %115 = vector.load %arg17[%c0_57, %c0_58] : memref<1x8xf32, #tpu.memory_space<vmem>>, vector<1x8xf32>
    tpu.vector_store %arg17[%c0_57, %c0_58], %114 {strides = array<i32>} : memref<1x8xf32, #tpu.memory_space<vmem>>, vector<1x8xf32>,
    return
  }
}

</mosaic_0001>

<llo_original>
// kernel: _lambda_.1
$region0: #{_lambda_.1}
  #allocation0 [shape = 'u32[]', space=smem, size = 0x4, offset = 0x4, fixed_abs, tag = 'smem constant byte address 0x4 - core index']
  #allocation1 [shape = 'u32[144,128]{1,0:T(1,128)}', space=vmem, size = 0x12000, scoped, tag = 'internal scratch']
  #allocation2 [shape = 'f32[1,1]{1,0:T(1,128)S(1)}', space=vmem, size = 0x200, scoped, tag = 'scoped memory for _lambda_.1']
  %s0 = inlined_call_operand.hbm [shape: f32[8,16], index: 0, kind: input, shape index: {}]
  %s1 = inlined_call_operand.vmem [shape: f32[8,4], index: 1, kind: input, shape index: {}]
  %s2 = inlined_call_operand.hbm [shape: f32[8,16], index: 2, kind: input, shape index: {}]
  %s3 = inlined_call_operand.vmem [shape: f32[32,16], index: 3, kind: input, shape index: {}]
  %s4 = inlined_call_operand.hbm [shape: f32[16,32], index: 4, kind: input, shape index: {}]
  %s5 = inlined_call_operand.hbm [shape: f32[4,32], index: 5, kind: input, shape index: {}]
  %s6 = inlined_call_operand.vmem [shape: f32[1,32], index: 6, kind: input, shape index: {}]
  %s7 = inlined_call_operand.vmem [shape: f32[32,16], index: 7, kind: input, shape index: {}]
  %s8 = inlined_call_operand.vmem [shape: f32[1,16], index: 8, kind: input, shape index: {}]
  %s9 = inlined_call_operand.vmem [shape: f32[32,16], index: 9, kind: input, shape index: {}]
  %s10 = inlined_call_operand.vmem [shape: f32[1,16], index: 10, kind: input, shape index: {}]
  %s11 = inlined_call_operand.vmem [shape: f32[16,32], index: 11, kind: input, shape index: {}]
  %s12 = inlined_call_operand.vmem [shape: f32[1,32], index: 12, kind: input, shape index: {}]
  %s13 = inlined_call_operand.vmem [shape: f32[1,32], index: 13, kind: input, shape index: {}]
  %s14 = inlined_call_operand.<no memory space> [shape: f32[1,1], index: 14, kind: input, shape index: {}]
  %s15 = inlined_call_operand.hbm [shape: f32[8,16], index: 15, kind: output, shape index: {0}]
  %s16 = inlined_call_operand.hbm [shape: f32[8,16], index: 16, kind: output, shape index: {1}]
  %s17 = inlined_call_operand.vmem [shape: f32[1,8], index: 17, kind: output, shape index: {2}]
  %18 = xla_tuple %s15, %s16, %s17
  %s19 = sld [smem:[#allocation0]]
  $region102: #{_lambda_.1} parent=0
    _
  %s21 = ssub.s32 1, %s19
  %s22 = scalar_select 0, %s21, %s19
  %v23 = vstv %s14
  %24 = vst [vmem:[#allocation2] sm:$0x1] %v23
  $region1: #{_lambda_.1} parent=0
    #allocation3 [shape = 'u8[4096]{0}', space=vmem, size = 0x1000, scoped, tag = 'input window, operand 0, single buffered']
    #allocation4 [shape = 's32[1]{0}', space=sflag, size = 0x4, scoped, tag = 'scoped memory for _lambda_.1']
    #allocation5 [shape = 's32[1]{0}', space=sflag, size = 0x4, scoped, tag = 'scoped memory for _lambda_.1']
    #allocation6 [shape = 'u8[4096]{0}', space=vmem, size = 0x1000, scoped, tag = 'input window, operand 2, single buffered']
    #allocation7 [shape = 's32[1]{0}', space=sflag, size = 0x4, scoped, tag = 'scoped memory for _lambda_.1']
    #allocation8 [shape = 'u8[8192]{0}', space=vmem, size = 0x2000, scoped, tag = 'input window, operand 4, single buffered']
    #allocation9 [shape = 'u8[2048]{0}', space=vmem, size = 0x800, scoped, tag = 'input window, operand 5, single buffered']
    #allocation10 [shape = 's32[1]{0}', space=sflag, size = 0x4, scoped, tag = 'scoped memory for _lambda_.1']
    #allocation11 [shape = 'u8[4096]{0}', space=vmem, size = 0x1000, scoped, tag = 'output window, operand 0, single buffered']
    #allocation12 [shape = 'u8[4096]{0}', space=vmem, size = 0x1000, scoped, tag = 'output window, operand 1, single buffered']
    #allocation13 [shape = 's32[1]{0}', space=sflag, size = 0x4, scoped, tag = 'scoped memory for _lambda_.1']
    %25 = vsyncpa [#allocation4], 0
    %26 = vsyncpa [#allocation7], 0
    %27 = vsyncpa [#allocation10], 0
    %28 = vsyncpa [#allocation5], 0
    %29 = vsyncpa [#allocation13], 0
    // Predicated region
    $region2: #{_lambda_.1} parent=1 // pred_check
      _
    $region3: #{_lambda_.1} parent=1 // pred_check_branch
      %31 = sbr.rel (0) target = $region5
    $region4: #{_lambda_.1} parent=1 // pred_region
      %s33 = ssub.s32 128, 128
      %34 = vsyncadd [#allocation4], %s33
      %s36 = sshll.u32 [#allocation3], 4
      %s37 = int_to_ptr.vmem [resolvable:$true] %s36
      %39 = dma.hbm_to_vmem [thread:$0]  %s0, 128, %s37, [#allocation4]
    $region5: #{_lambda_.1} parent=1 // pred_fallthru
      _
    // Predicated region
    $region6: #{_lambda_.1} parent=1 // pred_check
      _
    $region7: #{_lambda_.1} parent=1 // pred_check_branch
      %41 = sbr.rel (0) target = $region9
    $region8: #{_lambda_.1} parent=1 // pred_region
      _
    $region9: #{_lambda_.1} parent=1 // pred_fallthru
      _
    // Predicated region
    $region10: #{_lambda_.1} parent=1 // pred_check
      _
    $region11: #{_lambda_.1} parent=1 // pred_check_branch
      %43 = sbr.rel (0) target = $region13
    $region12: #{_lambda_.1} parent=1 // pred_region
      %s45 = ssub.s32 128, 128
      %46 = vsyncadd [#allocation7], %s45
      %s48 = sshll.u32 [#allocation6], 4
      %s49 = int_to_ptr.vmem [resolvable:$true] %s48
      %51 = dma.hbm_to_vmem [thread:$0]  %s2, 128, %s49, [#allocation7]
    $region13: #{_lambda_.1} parent=1 // pred_fallthru
      _
    // Predicated region
    $region14: #{_lambda_.1} parent=1 // pred_check
      _
    $region15: #{_lambda_.1} parent=1 // pred_check_branch
      %53 = sbr.rel (0) target = $region17
    $region16: #{_lambda_.1} parent=1 // pred_region
      _
    $region17: #{_lambda_.1} parent=1 // pred_fallthru
      _
    // Predicated region
    $region18: #{_lambda_.1} parent=1 // pred_check
      _
    $region19: #{_lambda_.1} parent=1 // pred_check_branch
      %55 = sbr.rel (0) target = $region21
    $region20: #{_lambda_.1} parent=1 // pred_region
      %s57 = ssub.s32 256, 256
      %58 = vsyncadd [#allocation7], %s57
      %s59 = sshll.u32 [#allocation8], 4
      %s60 = int_to_ptr.vmem [resolvable:$true] %s59
      %65 = dma.hbm_to_vmem [thread:$0]  %s4, 256, %s60, [#allocation7], 128, 128, 8
    $region21: #{_lambda_.1} parent=1 // pred_fallthru
      _
    // Predicated region
    $region22: #{_lambda_.1} parent=1 // pred_check
      _
    $region23: #{_lambda_.1} parent=1 // pred_check_branch
      %67 = sbr.rel (0) target = $region25
    $region24: #{_lambda_.1} parent=1 // pred_region
      %s69 = ssub.s32 64, 64
      %70 = vsyncadd [#allocation10], %s69
      %s72 = sshll.u32 [#allocation9], 4
      %s73 = int_to_ptr.vmem [resolvable:$true] %s72
      %75 = dma.hbm_to_vmem [thread:$0]  %s5, 64, %s73, [#allocation10]
    $region25: #{_lambda_.1} parent=1 // pred_fallthru
      _
    // Predicated region
    $region26: #{_lambda_.1} parent=1 // pred_check
      _
    $region27: #{_lambda_.1} parent=1 // pred_check_branch
      %77 = sbr.rel (0) target = $region29
    $region28: #{_lambda_.1} parent=1 // pred_region
      _
    $region29: #{_lambda_.1} parent=1 // pred_fallthru
      _
    // Predicated region
    $region30: #{_lambda_.1} parent=1 // pred_check
      _
    $region31: #{_lambda_.1} parent=1 // pred_check_branch
      %79 = sbr.rel (0) target = $region33
    $region32: #{_lambda_.1} parent=1 // pred_region
      _
    $region33: #{_lambda_.1} parent=1 // pred_fallthru
      _
    // Predicated region
    $region34: #{_lambda_.1} parent=1 // pred_check
      _
    $region35: #{_lambda_.1} parent=1 // pred_check_branch
      %81 = sbr.rel (0) target = $region37
    $region36: #{_lambda_.1} parent=1 // pred_region
      _
    $region37: #{_lambda_.1} parent=1 // pred_fallthru
      _
    // Predicated region
    $region38: #{_lambda_.1} parent=1 // pred_check
      _
    $region39: #{_lambda_.1} parent=1 // pred_check_branch
      %83 = sbr.rel (0) target = $region41
    $region40: #{_lambda_.1} parent=1 // pred_region
      _
    $region41: #{_lambda_.1} parent=1 // pred_fallthru
      _
    // Predicated region
    $region42: #{_lambda_.1} parent=1 // pred_check
      _
    $region43: #{_lambda_.1} parent=1 // pred_check_branch
      %85 = sbr.rel (0) target = $region45
    $region44: #{_lambda_.1} parent=1 // pred_region
      _
    $region45: #{_lambda_.1} parent=1 // pred_fallthru
      _
    // Predicated region
    $region46: #{_lambda_.1} parent=1 // pred_check
      _
    $region47: #{_lambda_.1} parent=1 // pred_check_branch
      %87 = sbr.rel (0) target = $region49
    $region48: #{_lambda_.1} parent=1 // pred_region
      _
    $region49: #{_lambda_.1} parent=1 // pred_fallthru
      _
    // Predicated region
    $region50: #{_lambda_.1} parent=1 // pred_check
      _
    $region51: #{_lambda_.1} parent=1 // pred_check_branch
      %89 = sbr.rel (0) target = $region53
    $region52: #{_lambda_.1} parent=1 // pred_region
      _
    $region53: #{_lambda_.1} parent=1 // pred_fallthru
      _
    // Predicated region
    $region54: #{_lambda_.1} parent=1 // pred_check
      _
    $region55: #{_lambda_.1} parent=1 // pred_check_branch
      %91 = sbr.rel (0) target = $region57
    $region56: #{_lambda_.1} parent=1 // pred_region
      _
    $region57: #{_lambda_.1} parent=1 // pred_fallthru
      _
    // Predicated region
    $region58: #{_lambda_.1} parent=1 // pred_check
      _
    $region59: #{_lambda_.1} parent=1 // pred_check_branch
      %93 = sbr.rel (0) target = $region61
    $region60: #{_lambda_.1} parent=1 // pred_region
      _
    $region61: #{_lambda_.1} parent=1 // pred_fallthru
      _
    // Predicated region
    $region62: #{_lambda_.1} parent=1 // pred_check
      _
    $region63: #{_lambda_.1} parent=1 // pred_check_branch
      %95 = sbr.rel (0) target = $region65
    $region64: #{_lambda_.1} parent=1 // pred_region
      %96 = dma.done [#allocation4], 128
    $region65: #{_lambda_.1} parent=1 // pred_fallthru
      _
    // Predicated region
    $region66: #{_lambda_.1} parent=1 // pred_check
      _
    $region67: #{_lambda_.1} parent=1 // pred_check_branch
      %98 = sbr.rel (0) target = $region69
    $region68: #{_lambda_.1} parent=1 // pred_region
      %99 = dma.done [#allocation7], 128
    $region69: #{_lambda_.1} parent=1 // pred_fallthru
      _
    // Predicated region
    $region70: #{_lambda_.1} parent=1 // pred_check
      _
    $region71: #{_lambda_.1} parent=1 // pred_check_branch
      %101 = sbr.rel (0) target = $region73
    $region72: #{_lambda_.1} parent=1 // pred_region
      %102 = dma.done [#allocation7], 256
    $region73: #{_lambda_.1} parent=1 // pred_fallthru
      _
    // Predicated region
    $region74: #{_lambda_.1} parent=1 // pred_check
      _
    $region75: #{_lambda_.1} parent=1 // pred_check_branch
      %104 = sbr.rel (0) target = $region77
    $region76: #{_lambda_.1} parent=1 // pred_region
      %105 = dma.done [#allocation10], 64
    $region77: #{_lambda_.1} parent=1 // pred_fallthru
      _
    %v106 = vld [vmem:[#allocation3] sm:$0xff]
    %v107 = vld [vmem:[%s1] sm:$0xff]
    %v108 = vld [vmem:[#allocation6] sm:$0xff]
    %v109 = vld [vmem:[#allocation8] sm:$0xff]
    %v110 = vld [vmem:[#allocation8 + $0x8] sm:$0xff]
    %v111 = vld [vmem:[#allocation9] sm:$0xf]
    %vm112 = vcmask 31744
    %v114 = vsel %vm112, %v107, 0
    %vm116 = vcmask 1043456
    %v118 = vsel %vm116, %v111, 0
    %120 = vmatprep.subr.mxu0 0.0
    %121 = vmatpush1.msra.mxu0 0.0
    %122 = vmatprep.subr.mxu0 0.0
    %123 = vmatpush1.msra.mxu0 0.0
    %124 = vmatprep.subr.mxu0 0.0
    %125 = vmatpush1.msra.mxu0 0.0
    %126 = vmatprep.subr.mxu0 0.0
    %127 = vmatpush1.msra.mxu0 0.0
    %128 = vmatprep.subr.mxu0 0.0
    %129 = vmatpush1.msra.mxu0 0.0
    %130 = vmatprep.subr.mxu0 0.0
    %131 = vmatpush1.msra.mxu0 0.0
    %132 = vmatprep.subr.mxu0 0.0
    %133 = vmatpush1.msra.mxu0 0.0
    %134 = vmatprep.subr.mxu0 0.0
    %135 = vmatpush1.msra.mxu0 0.0
    %136 = vmatprep.subr.mxu0 0.0
    %137 = vmatpush1.msra.mxu0 0.0
    %138 = vmatprep.subr.mxu0 0.0
    %139 = vmatpush1.msra.mxu0 0.0
    %140 = vmatprep.subr.mxu0 0.0
    %141 = vmatpush1.msra.mxu0 0.0
    %142 = vmatprep.subr.mxu0 0.0
    %143 = vmatpush1.msra.mxu0 0.0
    %144 = vmatprep.subr.mxu0 0.0
    %145 = vmatpush1.msra.mxu0 0.0
    %146 = vmatprep.subr.mxu0 0.0
    %147 = vmatpush1.msra.mxu0 0.0
    %148 = vmatprep.subr.mxu0 0.0
    %149 = vmatpush1.msra.mxu0 0.0
    %150 = vmatprep.subr.mxu0 0.0
    %151 = vmatpush1.msra.mxu0 %v118
    %152 = vmatprep.subr.mxu0 0.0
    %153 = vmatpush2.msra.mxu0 0.0
    %154 = vmatprep.subr.mxu0 0.0
    %155 = vmatpush2.msra.mxu0 0.0
    %156 = vmatprep.subr.mxu0 0.0
    %157 = vmatpush2.msra.mxu0 0.0
    %158 = vmatprep.subr.mxu0 0.0
    %159 = vmatpush2.msra.mxu0 0.0
    %160 = vmatprep.subr.mxu0 0.0
    %161 = vmatpush2.msra.mxu0 0.0
    %162 = vmatprep.subr.mxu0 0.0
    %163 = vmatpush2.msra.mxu0 0.0
    %164 = vmatprep.subr.mxu0 0.0
    %165 = vmatpush2.msra.mxu0 0.0
    %166 = vmatprep.subr.mxu0 0.0
    %167 = vmatpush2.msra.mxu0 0.0
    %168 = vmatprep.subr.mxu0 0.0
    %169 = vmatpush2.msra.mxu0 0.0
    %170 = vmatprep.subr.mxu0 0.0
    %171 = vmatpush2.msra.mxu0 0.0
    %172 = vmatprep.subr.mxu0 0.0
    %173 = vmatpush2.msra.mxu0 0.0
    %174 = vmatprep.subr.mxu0 0.0
    %175 = vmatpush2.msra.mxu0 0.0
    %176 = vmatprep.subr.mxu0 0.0
    %177 = vmatpush2.msra.mxu0 0.0
    %178 = vmatprep.subr.mxu0 0.0
    %179 = vmatpush2.msra.mxu0 0.0
    %180 = vmatprep.subr.mxu0 0.0
    %181 = vmatpush2.msra.mxu0 0.0
    %182 = vmatprep.subr.mxu0 0.0
    %183 = vmatpush2.msra.mxu0 0.0
    %184 = vmatprep.mubr.f32.mxu0 0.0
    %185 = vmatmul.mubr.f32.gmra.mxu0 %v114
    %v186 = vpop.f32.mrf.mxu0
    %v187 = vadd.f32 0.0, %v186
    %v188 = vpop.f32.mrf.mxu0
    %189 = vdwg.mxu0
    %vm190 = vcmask 130048
    %v192 = vsel %vm190, %v106, 0
    %194 = vmatprep.subr.mxu0 0.0
    %195 = vmatpush1.msra.mxu0 0.0
    %196 = vmatprep.subr.mxu0 0.0
    %197 = vmatpush1.msra.mxu0 0.0
    %198 = vmatprep.subr.mxu0 0.0
    %199 = vmatpush1.msra.mxu0 0.0
    %200 = vmatprep.subr.mxu0 0.0
    %201 = vmatpush1.msra.mxu0 0.0
    %202 = vmatprep.subr.mxu0 0.0
    %203 = vmatpush1.msra.mxu0 0.0
    %204 = vmatprep.subr.mxu0 0.0
    %205 = vmatpush1.msra.mxu0 0.0
    %206 = vmatprep.subr.mxu0 0.0
    %207 = vmatpush1.msra.mxu0 0.0
    %208 = vmatprep.subr.mxu0 0.0
    %209 = vmatpush1.msra.mxu0 0.0
    %210 = vmatprep.subr.mxu0 0.0
    %211 = vmatpush1.msra.mxu0 0.0
    %212 = vmatprep.subr.mxu0 0.0
    %213 = vmatpush1.msra.mxu0 0.0
    %214 = vmatprep.subr.mxu0 0.0
    %215 = vmatpush1.msra.mxu0 0.0
    %216 = vmatprep.subr.mxu0 0.0
    %217 = vmatpush1.msra.mxu0 0.0
    %218 = vmatprep.subr.mxu0 0.0
    %219 = vmatpush1.msra.mxu0 0.0
    %220 = vmatprep.subr.mxu0 0.0
    %221 = vmatpush1.msra.mxu0 0.0
    %222 = vmatprep.subr.mxu0 0.0
    %223 = vmatpush1.msra.mxu0 %v110
    %224 = vmatprep.subr.mxu0 0.0
    %225 = vmatpush1.msra.mxu0 %v109
    %226 = vmatprep.subr.mxu0 0.0
    %227 = vmatpush2.msra.mxu0 0.0
    %228 = vmatprep.subr.mxu0 0.0
    %229 = vmatpush2.msra.mxu0 0.0
    %230 = vmatprep.subr.mxu0 0.0
    %231 = vmatpush2.msra.mxu0 0.0
    %232 = vmatprep.subr.mxu0 0.0
    %233 = vmatpush2.msra.mxu0 0.0
    %234 = vmatprep.subr.mxu0 0.0
    %235 = vmatpush2.msra.mxu0 0.0
    %236 = vmatprep.subr.mxu0 0.0
    %237 = vmatpush2.msra.mxu0 0.0
    %238 = vmatprep.subr.mxu0 0.0
    %239 = vmatpush2.msra.mxu0 0.0
    %240 = vmatprep.subr.mxu0 0.0
    %241 = vmatpush2.msra.mxu0 0.0
    %242 = vmatprep.subr.mxu0 0.0
    %243 = vmatpush2.msra.mxu0 0.0
    %244 = vmatprep.subr.mxu0 0.0
    %245 = vmatpush2.msra.mxu0 0.0
    %246 = vmatprep.subr.mxu0 0.0
    %247 = vmatpush2.msra.mxu0 0.0
    %248 = vmatprep.subr.mxu0 0.0
    %249 = vmatpush2.msra.mxu0 0.0
    %250 = vmatprep.subr.mxu0 0.0
    %251 = vmatpush2.msra.mxu0 0.0
    %252 = vmatprep.subr.mxu0 0.0
    %253 = vmatpush2.msra.mxu0 0.0
    %254 = vmatprep.subr.mxu0 0.0
    %255 = vmatpush2.msra.mxu0 0.0
    %256 = vmatprep.subr.mxu0 0.0
    %257 = vmatpush2.msra.mxu0 0.0
    %258 = vmatprep.mubr.f32.mxu0 0.0
    %259 = vmatmul.mubr.f32.gmra.mxu0 %v192
    %v260 = vpop.f32.mrf.mxu0
    %v261 = vadd.f32 %v187, %v260
    %v262 = vpop.f32.mrf.mxu0
    %263 = vdwg.mxu0
    %v264 = vld [vmem:[%s6] sm:$0x1]
    %v266 = vlaneseq
    %v267 = vshrl.u32 %v266, 7
    %v268 = vsub.s32 0, %v267
    %v269 = vrot.slane %v264, %v268
    %v271 = vadd.f32 %v261, %v269
    %v272 = vtanh.pop %v271
    %v273 = vld [vmem:[%s7] sm:$0xff]
    %v274 = vld [vmem:[%s7 + $0x8] sm:$0xff]
    %v275 = vld [vmem:[%s7 + $0x10] sm:$0xff]
    %v276 = vld [vmem:[%s7 + $0x18] sm:$0xff]
    %v277 = vld [vmem:[%s8] sm:$0x1]
    %v279 = vlaneseq
    %v280 = vshrl.u32 %v279, 7
    %v281 = vsub.s32 0, %v280
    %v282 = vrot.slane %v277, %v281
    %vm284 = vcmask 261120
    %v286 = vsel %vm284, %v272, 0
    %288 = vmatprep.subr.mxu0 0.0
    %289 = vmatpush1.msra.mxu0 0.0
    %290 = vmatprep.subr.mxu0 0.0
    %291 = vmatpush1.msra.mxu0 0.0
    %292 = vmatprep.subr.mxu0 0.0
    %293 = vmatpush1.msra.mxu0 0.0
    %294 = vmatprep.subr.mxu0 0.0
    %295 = vmatpush1.msra.mxu0 0.0
    %296 = vmatprep.subr.mxu0 0.0
    %297 = vmatpush1.msra.mxu0 0.0
    %298 = vmatprep.subr.mxu0 0.0
    %299 = vmatpush1.msra.mxu0 0.0
    %300 = vmatprep.subr.mxu0 0.0
    %301 = vmatpush1.msra.mxu0 0.0
    %302 = vmatprep.subr.mxu0 0.0
    %303 = vmatpush1.msra.mxu0 0.0
    %304 = vmatprep.subr.mxu0 0.0
    %305 = vmatpush1.msra.mxu0 0.0
    %306 = vmatprep.subr.mxu0 0.0
    %307 = vmatpush1.msra.mxu0 0.0
    %308 = vmatprep.subr.mxu0 0.0
    %309 = vmatpush1.msra.mxu0 0.0
    %310 = vmatprep.subr.mxu0 0.0
    %311 = vmatpush1.msra.mxu0 0.0
    %312 = vmatprep.subr.mxu0 0.0
    %313 = vmatpush1.msra.mxu0 %v276
    %314 = vmatprep.subr.mxu0 0.0
    %315 = vmatpush1.msra.mxu0 %v275
    %316 = vmatprep.subr.mxu0 0.0
    %317 = vmatpush1.msra.mxu0 %v274
    %318 = vmatprep.subr.mxu0 0.0
    %319 = vmatpush1.msra.mxu0 %v273
    %320 = vmatprep.subr.mxu0 0.0
    %321 = vmatpush2.msra.mxu0 0.0
    %322 = vmatprep.subr.mxu0 0.0
    %323 = vmatpush2.msra.mxu0 0.0
    %324 = vmatprep.subr.mxu0 0.0
    %325 = vmatpush2.msra.mxu0 0.0
    %326 = vmatprep.subr.mxu0 0.0
    %327 = vmatpush2.msra.mxu0 0.0
    %328 = vmatprep.subr.mxu0 0.0
    %329 = vmatpush2.msra.mxu0 0.0
    %330 = vmatprep.subr.mxu0 0.0
    %331 = vmatpush2.msra.mxu0 0.0
    %332 = vmatprep.subr.mxu0 0.0
    %333 = vmatpush2.msra.mxu0 0.0
    %334 = vmatprep.subr.mxu0 0.0
    %335 = vmatpush2.msra.mxu0 0.0
    %336 = vmatprep.subr.mxu0 0.0
    %337 = vmatpush2.msra.mxu0 0.0
    %338 = vmatprep.subr.mxu0 0.0
    %339 = vmatpush2.msra.mxu0 0.0
    %340 = vmatprep.subr.mxu0 0.0
    %341 = vmatpush2.msra.mxu0 0.0
    %342 = vmatprep.subr.mxu0 0.0
    %343 = vmatpush2.msra.mxu0 0.0
    %344 = vmatprep.subr.mxu0 0.0
    %345 = vmatpush2.msra.mxu0 0.0
    %346 = vmatprep.subr.mxu0 0.0
    %347 = vmatpush2.msra.mxu0 0.0
    %348 = vmatprep.subr.mxu0 0.0
    %349 = vmatpush2.msra.mxu0 0.0
    %350 = vmatprep.subr.mxu0 0.0
    %351 = vmatpush2.msra.mxu0 0.0
    %352 = vmatprep.mubr.f32.mxu0 0.0
    %353 = vmatmul.mubr.f32.gmra.mxu0 %v286
    %v354 = vpop.f32.mrf.mxu0
    %v355 = vadd.f32 %v282, %v354
    %v356 = vpop.f32.mrf.mxu0
    %357 = vdwg.mxu0
    %v358 = vld [vmem:[%s9] sm:$0xff]
    %v359 = vld [vmem:[%s9 + $0x8] sm:$0xff]
    %v360 = vld [vmem:[%s9 + $0x10] sm:$0xff]
    %v361 = vld [vmem:[%s9 + $0x18] sm:$0xff]
    %v362 = vld [vmem:[%s10] sm:$0x1]
    %v364 = vlaneseq
    %v365 = vshrl.u32 %v364, 7
    %v366 = vsub.s32 0, %v365
    %v367 = vrot.slane %v362, %v366
    %369 = vmatprep.subr.mxu0 0.0
    %370 = vmatpush1.msra.mxu0 0.0
    %371 = vmatprep.subr.mxu0 0.0
    %372 = vmatpush1.msra.mxu0 0.0
    %373 = vmatprep.subr.mxu0 0.0
    %374 = vmatpush1.msra.mxu0 0.0
    %375 = vmatprep.subr.mxu0 0.0
    %376 = vmatpush1.msra.mxu0 0.0
    %377 = vmatprep.subr.mxu0 0.0
    %378 = vmatpush1.msra.mxu0 0.0
    %379 = vmatprep.subr.mxu0 0.0
    %380 = vmatpush1.msra.mxu0 0.0
    %381 = vmatprep.subr.mxu0 0.0
    %382 = vmatpush1.msra.mxu0 0.0
    %383 = vmatprep.subr.mxu0 0.0
    %384 = vmatpush1.msra.mxu0 0.0
    %385 = vmatprep.subr.mxu0 0.0
    %386 = vmatpush1.msra.mxu0 0.0
    %387 = vmatprep.subr.mxu0 0.0
    %388 = vmatpush1.msra.mxu0 0.0
    %389 = vmatprep.subr.mxu0 0.0
    %390 = vmatpush1.msra.mxu0 0.0
    %391 = vmatprep.subr.mxu0 0.0
    %392 = vmatpush1.msra.mxu0 0.0
    %393 = vmatprep.subr.mxu0 0.0
    %394 = vmatpush1.msra.mxu0 %v361
    %395 = vmatprep.subr.mxu0 0.0
    %396 = vmatpush1.msra.mxu0 %v360
    %397 = vmatprep.subr.mxu0 0.0
    %398 = vmatpush1.msra.mxu0 %v359
    %399 = vmatprep.subr.mxu0 0.0
    %400 = vmatpush1.msra.mxu0 %v358
    %401 = vmatprep.subr.mxu0 0.0
    %402 = vmatpush2.msra.mxu0 0.0
    %403 = vmatprep.subr.mxu0 0.0
    %404 = vmatpush2.msra.mxu0 0.0
    %405 = vmatprep.subr.mxu0 0.0
    %406 = vmatpush2.msra.mxu0 0.0
    %407 = vmatprep.subr.mxu0 0.0
    %408 = vmatpush2.msra.mxu0 0.0
    %409 = vmatprep.subr.mxu0 0.0
    %410 = vmatpush2.msra.mxu0 0.0
    %411 = vmatprep.subr.mxu0 0.0
    %412 = vmatpush2.msra.mxu0 0.0
    %413 = vmatprep.subr.mxu0 0.0
    %414 = vmatpush2.msra.mxu0 0.0
    %415 = vmatprep.subr.mxu0 0.0
    %416 = vmatpush2.msra.mxu0 0.0
    %417 = vmatprep.subr.mxu0 0.0
    %418 = vmatpush2.msra.mxu0 0.0
    %419 = vmatprep.subr.mxu0 0.0
    %420 = vmatpush2.msra.mxu0 0.0
    %421 = vmatprep.subr.mxu0 0.0
    %422 = vmatpush2.msra.mxu0 0.0
    %423 = vmatprep.subr.mxu0 0.0
    %424 = vmatpush2.msra.mxu0 0.0
    %425 = vmatprep.subr.mxu0 0.0
    %426 = vmatpush2.msra.mxu0 0.0
    %427 = vmatprep.subr.mxu0 0.0
    %428 = vmatpush2.msra.mxu0 0.0
    %429 = vmatprep.subr.mxu0 0.0
    %430 = vmatpush2.msra.mxu0 0.0
    %431 = vmatprep.subr.mxu0 0.0
    %432 = vmatpush2.msra.mxu0 0.0
    %433 = vmatprep.mubr.f32.mxu0 0.0
    %434 = vmatmul.mubr.f32.gmra.mxu0 %v286
    %v435 = vpop.f32.mrf.mxu0
    %v436 = vadd.f32 %v367, %v435
    %v437 = vpop.f32.mrf.mxu0
    %438 = vdwg.mxu0
    %439 = vst.msk [vmem:[#allocation11] sm:$0xff] %vm190, %v355
    %440 = vst.msk [vmem:[#allocation12] sm:$0xff] %vm190, %v436
    %v441 = vmax.f32 %v436, -30.0
    %v442 = vmin.f32 %v441, 30.0
    %v443 = vsub.f32 %v108, %v355
    %v444 = vmul.f32 %v443, %v443
    %v445 = vsub.f32 0.0, %v442
    %v446 = vmul.f32 %v445, 1.442695
    %v447 = vpow.pop %v446
    %v448 = vmul.f32 %v444, %v447
    %v449 = vadd.f32 %v448, %v436
    %v450 = vadd.f32 %v449, 1.837877
    %v451 = vmul.f32 %v450, -0.5
    %v452 = vsel %vm190, %v451, 0.0
    %453 = vadd.xlane.f32.xlu0 %v452
    %v454 = vpop.xlane.xlu0 %453
    %v455 = vrot.slane %v454, 4
    %v456 = vadd.f32 %v454, %v455
    %v457 = vrot.slane %v456, 2
    %v458 = vadd.f32 %v456, %v457
    %v459 = vrot.slane %v458, 1
    %v460 = vadd.f32 %v458, %v459
    %v461 = vsub.f32 0.0, %v460
    %v462 = vmul.f32 %v461, 0.125
    %v463 = vmul.f32 %v436, %v436
    %v464 = vsel %vm190, %v463, 0.0
    %465 = vadd.xlane.f32.xlu0 %v464
    %v466 = vpop.xlane.xlu0 %465
    %v467 = vrot.slane %v466, 4
    %v468 = vadd.f32 %v466, %v467
    %v469 = vrot.slane %v468, 2
    %v470 = vadd.f32 %v468, %v469
    %v471 = vrot.slane %v470, 1
    %v472 = vadd.f32 %v470, %v471
    %v473 = vmul.f32 %v472, 0.01
    %v474 = vmul.f32 %v473, 0.0078125
    %v475 = vadd.f32 %v462, %v474
    %v476 = vmul.f32 %v442, 0.5
    %v477 = vmul.f32 %v476, 1.442695
    %v478 = vpow.pop %v477
    %v479 = vld [vmem:[%s3] sm:$0xff]
    %v480 = vld [vmem:[%s3 + $0x8] sm:$0xff]
    %v481 = vld [vmem:[%s3 + $0x10] sm:$0xff]
    %v482 = vld [vmem:[%s3 + $0x18] sm:$0xff]
    %v483 = vmul.f32 %v478, %v479
    %v484 = vmul.f32 %v478, %v480
    %v485 = vmul.f32 %v478, %v481
    %v486 = vmul.f32 %v478, %v482
    %v487 = vadd.f32 %v355, %v483
    %v488 = vadd.f32 %v355, %v484
    %v489 = vadd.f32 %v355, %v485
    %v490 = vadd.f32 %v355, %v486
    %v491 = vld [vmem:[%s11] sm:$0xff]
    %v492 = vld [vmem:[%s11 + $0x8] sm:$0xff]
    %v493 = vld [vmem:[%s12] sm:$0x1]
    %v495 = vlaneseq
    %v496 = vshrl.u32 %v495, 7
    %v497 = vsub.s32 0, %v496
    %v498 = vrot.slane %v493, %v497
    %v501 = vsel %vm190, %v108, 0
    %v504 = vsel %vm190, %v487, 0
    %v507 = vsel %vm190, %v488, 0
    %v510 = vsel %vm190, %v489, 0
    %v513 = vsel %vm190, %v490, 0
    %515 = vmatprep.subr.mxu0 0.0
    %516 = vmatpush1.msra.mxu0 0.0
    %517 = vmatprep.subr.mxu0 0.0
    %518 = vmatpush1.msra.mxu0 0.0
    %519 = vmatprep.subr.mxu0 0.0
    %520 = vmatpush1.msra.mxu0 0.0
    %521 = vmatprep.subr.mxu0 0.0
    %522 = vmatpush1.msra.mxu0 0.0
    %523 = vmatprep.subr.mxu0 0.0
    %524 = vmatpush1.msra.mxu0 0.0
    %525 = vmatprep.subr.mxu0 0.0
    %526 = vmatpush1.msra.mxu0 0.0
    %527 = vmatprep.subr.mxu0 0.0
    %528 = vmatpush1.msra.mxu0 0.0
    %529 = vmatprep.subr.mxu0 0.0
    %530 = vmatpush1.msra.mxu0 0.0
    %531 = vmatprep.subr.mxu0 0.0
    %532 = vmatpush1.msra.mxu0 0.0
    %533 = vmatprep.subr.mxu0 0.0
    %534 = vmatpush1.msra.mxu0 0.0
    %535 = vmatprep.subr.mxu0 0.0
    %536 = vmatpush1.msra.mxu0 0.0
    %537 = vmatprep.subr.mxu0 0.0
    %538 = vmatpush1.msra.mxu0 0.0
    %539 = vmatprep.subr.mxu0 0.0
    %540 = vmatpush1.msra.mxu0 0.0
    %541 = vmatprep.subr.mxu0 0.0
    %542 = vmatpush1.msra.mxu0 0.0
    %543 = vmatprep.subr.mxu0 0.0
    %544 = vmatpush1.msra.mxu0 %v492
    %545 = vmatprep.subr.mxu0 0.0
    %546 = vmatpush1.msra.mxu0 %v491
    %547 = vmatprep.subr.mxu0 0.0
    %548 = vmatpush2.msra.mxu0 0.0
    %549 = vmatprep.subr.mxu0 0.0
    %550 = vmatpush2.msra.mxu0 0.0
    %551 = vmatprep.subr.mxu0 0.0
    %552 = vmatpush2.msra.mxu0 0.0
    %553 = vmatprep.subr.mxu0 0.0
    %554 = vmatpush2.msra.mxu0 0.0
    %555 = vmatprep.subr.mxu0 0.0
    %556 = vmatpush2.msra.mxu0 0.0
    %557 = vmatprep.subr.mxu0 0.0
    %558 = vmatpush2.msra.mxu0 0.0
    %559 = vmatprep.subr.mxu0 0.0
    %560 = vmatpush2.msra.mxu0 0.0
    %561 = vmatprep.subr.mxu0 0.0
    %562 = vmatpush2.msra.mxu0 0.0
    %563 = vmatprep.subr.mxu0 0.0
    %564 = vmatpush2.msra.mxu0 0.0
    %565 = vmatprep.subr.mxu0 0.0
    %566 = vmatpush2.msra.mxu0 0.0
    %567 = vmatprep.subr.mxu0 0.0
    %568 = vmatpush2.msra.mxu0 0.0
    %569 = vmatprep.subr.mxu0 0.0
    %570 = vmatpush2.msra.mxu0 0.0
    %571 = vmatprep.subr.mxu0 0.0
    %572 = vmatpush2.msra.mxu0 0.0
    %573 = vmatprep.subr.mxu0 0.0
    %574 = vmatpush2.msra.mxu0 0.0
    %575 = vmatprep.subr.mxu0 0.0
    %576 = vmatpush2.msra.mxu0 0.0
    %577 = vmatprep.subr.mxu0 0.0
    %578 = vmatpush2.msra.mxu0 0.0
    %579 = vmatprep.mubr.f32.mxu0 0.0
    %580 = vmatmul.mubr.f32.gmra.mxu0 %v501
    %v581 = vpop.f32.mrf.mxu0
    %v582 = vadd.f32 %v498, %v581
    %v583 = vpop.f32.mrf.mxu0
    %584 = vmatprep.mubr.f32.mxu0 0.0
    %585 = vmatmul.mubr.f32.gmra.mxu0 %v504
    %v586 = vpop.f32.mrf.mxu0
    %v587 = vadd.f32 %v498, %v586
    %v588 = vpop.f32.mrf.mxu0
    %589 = vmatprep.mubr.f32.mxu0 0.0
    %590 = vmatmul.mubr.f32.gmra.mxu0 %v507
    %v591 = vpop.f32.mrf.mxu0
    %v592 = vadd.f32 %v498, %v591
    %v593 = vpop.f32.mrf.mxu0
    %594 = vmatprep.mubr.f32.mxu0 0.0
    %595 = vmatmul.mubr.f32.gmra.mxu0 %v510
    %v596 = vpop.f32.mrf.mxu0
    %v597 = vadd.f32 %v498, %v596
    %v598 = vpop.f32.mrf.mxu0
    %599 = vmatprep.mubr.f32.mxu0 0.0
    %600 = vmatmul.mubr.f32.gmra.mxu0 %v513
    %v601 = vpop.f32.mrf.mxu0
    %v602 = vadd.f32 %v498, %v601
    %v603 = vpop.f32.mrf.mxu0
    %604 = vdwg.mxu0
    %v605 = vtanh.pop %v582
    %v606 = vtanh.pop %v587
    %v607 = vtanh.pop %v592
    %v608 = vtanh.pop %v597
    %v609 = vtanh.pop %v602
    %v610 = vld [vmem:[%s13] sm:$0x1]
    %v612 = vlaneseq
    %v613 = vshrl.u32 %v612, 7
    %v614 = vsub.s32 0, %v613
    %v615 = vrot.slane %v610, %v614
    %v617 = vmul.f32 %v605, %v615
    %v618 = vmul.f32 %v606, %v615
    %v619 = vmul.f32 %v607, %v615
    %v620 = vmul.f32 %v608, %v615
    %v621 = vmul.f32 %v609, %v615
    %v622 = vsel %vm284, %v617, 0.0
    %623 = vadd.xlane.f32.xlu0 %v622
    %v624 = vpop.xlane.xlu0 %623
    %v625 = vsel %vm284, %v618, 0.0
    %626 = vadd.xlane.f32.xlu0 %v625
    %v627 = vpop.xlane.xlu0 %626
    %v628 = vsel %vm284, %v619, 0.0
    %629 = vadd.xlane.f32.xlu0 %v628
    %v630 = vpop.xlane.xlu0 %629
    %v631 = vsel %vm284, %v620, 0.0
    %632 = vadd.xlane.f32.xlu0 %v631
    %v633 = vpop.xlane.xlu0 %632
    %v634 = vsel %vm284, %v621, 0.0
    %635 = vadd.xlane.f32.xlu0 %v634
    %v636 = vpop.xlane.xlu0 %635
    %v637 = vld [vmem:[#allocation2] sm:$0x1]
    %v639 = vlaneseq
    %v640 = vshrl.u32 %v639, 7
    %v641 = vsub.s32 0, %v640
    %v642 = vrot.slane %v637, %v641
    %v644 = vadd.f32 %v624, %v642
    %v645 = vadd.f32 %v627, %v642
    %v646 = vadd.f32 %v630, %v642
    %v647 = vadd.f32 %v633, %v642
    %v648 = vadd.f32 %v636, %v642
    %v649 = vadd.f32 %v645, %v646
    %v650 = vadd.f32 %v649, %v647
    %v651 = vadd.f32 %v650, %v648
    %v652 = vmul.f32 %v651, 0.25
    %v653 = vsub.f32 %v644, %v652
    %v654 = vmul.f32 %v653, 0.5
    %v655 = vmul.f32 %v654, %v653
    %vm656 = vcmask 7168
    %v657 = vsel %vm656, %v655, 0.0
    %v658 = vrot.slane %v657, 4
    %v659 = vadd.f32 %v657, %v658
    %v660 = vrot.slane %v659, 2
    %v661 = vadd.f32 %v659, %v660
    %v662 = vrot.slane %v661, 1
    %v663 = vadd.f32 %v661, %v662
    %v664 = vmul.f32 %v663, 0.125
    %v665 = vlaneseq
    %v666 = vand.u32 %v665, 127
    %vm667 = vcmp.eq.s32.totalorder %v666, 0
    %vm668 = vcmp.eq.s32.totalorder %v666, 1
    %vm669 = vcmp.eq.s32.totalorder %v666, 2
    %v670 = vsel %vm669, %v475, 0.0
    %672 = vset.pattern.permute.xlu0 0
    %673 = vperm.xlu0 %672, %v664
    %v674 = vpop.permute.xlu0 %673
    %v676 = vsel %vm668, %v674, %v670
    %v677 = vsel %vm667, %v674, %v676
    %vm678 = vcmask 57344
    %679 = vst.msk [vmem:[%s17] sm:$0x1] %vm678, %v677
    // Predicated region
    $region78: #{_lambda_.1} parent=1 // pred_check
      _
    $region79: #{_lambda_.1} parent=1 // pred_check_branch
      %681 = sbr.rel (0) target = $region81
    $region80: #{_lambda_.1} parent=1 // pred_region
      %s683 = ssub.s32 128, 128
      %684 = vsyncadd [#allocation5], %s683
      %s686 = sshll.u32 [#allocation11], 4
      %s687 = int_to_ptr.vmem [resolvable:$true] %s686
      %689 = dma.vmem_to_hbm [thread:$0]  %s687, 128, %s15, [#allocation5]
    $region81: #{_lambda_.1} parent=1 // pred_fallthru
      _
    // Predicated region
    $region82: #{_lambda_.1} parent=1 // pred_check
      _
    $region83: #{_lambda_.1} parent=1 // pred_check_branch
      %691 = sbr.rel (0) target = $region85
    $region84: #{_lambda_.1} parent=1 // pred_region
      %s693 = ssub.s32 128, 128
      %694 = vsyncadd [#allocation13], %s693
      %s696 = sshll.u32 [#allocation12], 4
      %s697 = int_to_ptr.vmem [resolvable:$true] %s696
      %699 = dma.vmem_to_hbm [thread:$0]  %s697, 128, %s16, [#allocation13]
    $region85: #{_lambda_.1} parent=1 // pred_fallthru
      _
    // Predicated region
    $region86: #{_lambda_.1} parent=1 // pred_check
      _
    $region87: #{_lambda_.1} parent=1 // pred_check_branch
      %701 = sbr.rel (0) target = $region89
    $region88: #{_lambda_.1} parent=1 // pred_region
      _
    $region89: #{_lambda_.1} parent=1 // pred_fallthru
      _
    // Predicated region
    $region90: #{_lambda_.1} parent=1 // pred_check
      _
    $region91: #{_lambda_.1} parent=1 // pred_check_branch
      %703 = sbr.rel (0) target = $region93
    $region92: #{_lambda_.1} parent=1 // pred_region
      %704 = dma.done [#allocation5], 128
    $region93: #{_lambda_.1} parent=1 // pred_fallthru
      _
    // Predicated region
    $region94: #{_lambda_.1} parent=1 // pred_check
      _
    $region95: #{_lambda_.1} parent=1 // pred_check_branch
      %706 = sbr.rel (0) target = $region97
    $region96: #{_lambda_.1} parent=1 // pred_region
      %707 = dma.done [#allocation13], 128
    $region97: #{_lambda_.1} parent=1 // pred_fallthru
      _
    // Predicated region
    $region98: #{_lambda_.1} parent=1 // pred_check
      _
    $region99: #{_lambda_.1} parent=1 // pred_check_branch
      %709 = sbr.rel (0) target = $region101
    $region100: #{_lambda_.1} parent=1 // pred_region
      _
    $region101: #{_lambda_.1} parent=1 // pred_fallthru
      _
    %710 = vsyncpa [#allocation4], 1
    %711 = vsyncpa [#allocation7], 1
    %712 = vsyncpa [#allocation10], 1
    %713 = vsyncpa [#allocation5], 1
    %714 = vsyncpa [#allocation13], 1

</llo_original>
